<compile_context>
chip_gen: v5e
topology: v5e:2x2
jax: 0.10.0
libtpu: 0.0.40
codegen_flags: <defaults>
</compile_context>

<pallas_src>
import jax
import jax.numpy as jnp
from jax.experimental import pallas as pl
from jax.experimental.pallas import tpu as pltpu


_LANES = 1024       # lane-dense column width (multiple of 128)
_TILE_ROWS = 512    # rows per block (multiple of 32 -> safe for packed dtypes)


def _rezero_kernel(alpha_ref, x_ref, o_ref):
    # alpha_ref: (1,) f32 in SMEM.  Multiply in f32, cast to output dtype.
    a = alpha_ref[0]
    o_ref[...] = (a * x_ref[...].astype(jnp.float32)).astype(o_ref.dtype)


def rezero(x: jax.Array, alpha: jax.Array) -> jax.Array:
    """Computes alpha * x with a Pallas TPU kernel.

    x: any-rank array (e.g. NCHW). alpha: shape-(1,) scalar parameter.
    """
    orig_shape = x.shape
    orig_dtype = x.dtype
    n = int(x.size)

    flat = x.reshape(-1)

    # Pick a lane-dense column width; pad (cheaply) if nothing divides.
    if n % _LANES == 0:
        cols = _LANES
        padded = flat
    else:
        cols = 128
        pad = (-n) % cols
        padded = jnp.pad(flat, (0, pad)) if pad else flat

    rows = int(padded.size) // cols
    x2d = padded.reshape(rows, cols)

    # Tile rows.  If rows <= _TILE_ROWS the block equals the full row extent
    # (always legal); otherwise the 512-row block is (8,128)-aligned and the
    # last partial block is handled automatically by Pallas.
    tr = min(_TILE_ROWS, rows)
    grid = (pl.cdiv(rows, tr),)

    alpha_f32 = alpha.reshape(1).astype(jnp.float32)

    out2d = pl.pallas_call(
        _rezero_kernel,
        out_shape=jax.ShapeDtypeStruct((rows, cols), orig_dtype),
        grid_spec=pl.GridSpec(
            grid=grid,
            in_specs=[
                # scalar parameter -> SMEM, unblocked
                pl.BlockSpec(memory_space=pltpu.SMEM),
                # lane-dense row tiles of the input
                pl.BlockSpec((tr, cols), lambda i: (i, 0)),
            ],
            out_specs=pl.BlockSpec((tr, cols), lambda i: (i, 0)),
        ),
        compiler_params=pltpu.CompilerParams(
            dimension_semantics=("parallel",),
        ),
    )(alpha_f32, x2d)

    out_flat = out2d.reshape(-1)[:n]
    return out_flat.reshape(orig_shape)


if __name__ == "__main__":
    key = jax.random.PRNGKey(0)

    # Small NCHW input consistent with the PyTorch module's generic forward.
    x = jax.random.normal(key, (2, 4, 16, 16), dtype=jnp.float32)

    # Deterministic parameter init, matching torch.zeros(size=(1,)).
    alpha = jnp.zeros((1,), dtype=jnp.float32)

    out = rezero(x, alpha)
    jax.block_until_ready(out)
    assert out.shape == x.shape and out.dtype == x.dtype
    assert jnp.allclose(out, alpha[0] * x)

    # Nonzero alpha to exercise the multiply path.
    alpha2 = jnp.array([0.37], dtype=jnp.float32)
    out2 = rezero(x, alpha2)
    jax.block_until_ready(out2)
    assert jnp.allclose(out2, alpha2[0] * x, rtol=1e-6, atol=1e-6)

    # Larger input to exercise the multi-tile (grid > 1) row-pipelined path.
    k2 = jax.random.PRNGKey(0)
    x_big = jax.random.normal(k2, (8, 8, 128, 128), dtype=jnp.float32)
    out_big = rezero(x_big, alpha2)
    jax.block_until_ready(out_big)
    assert jnp.allclose(out_big, alpha2[0] * x_big, rtol=1e-6, atol=1e-6)

    # Non-128-divisible element count exercises the pad/remainder path.
    x_odd = jax.random.normal(key, (2, 3, 5, 7), dtype=jnp.float32)
    out_odd = rezero(x_odd, alpha2)
    jax.block_until_ready(out_odd)
    assert jnp.allclose(out_odd, alpha2[0] * x_odd, rtol=1e-6, atol=1e-6)

    # bf16 input: multiply done in f32 (PyTorch-like promotion), cast back.
    x_bf16 = x.astype(jnp.bfloat16)
    out_bf16 = rezero(x_bf16, alpha2)
    jax.block_until_ready(out_bf16)
    ref_bf16 = (alpha2[0].astype(jnp.float32)
                * x_bf16.astype(jnp.float32)).astype(jnp.bfloat16)
    assert out_bf16.dtype == jnp.bfloat16
    assert jnp.allclose(out_bf16.astype(jnp.float32),
                        ref_bf16.astype(jnp.float32), rtol=1e-2, atol=1e-2)

    print("KERNEL_OK")
</pallas_src>

<mosaic_0001>
module attributes {stable_mosaic.version = 11 : i64} {
  func.func @_rezero_kernel(%arg0: i32, %arg1: memref<1xf32, #tpu.memory_space<smem>>, %arg2: memref<2x1024xf32, #tpu.memory_space<vmem>>, %arg3: memref<2x1024xf32, #tpu.memory_space<vmem>>) attributes {dimension_semantics = [#tpu.dimension_semantics<parallel>], iteration_bounds = array<i64: 1>, scalar_prefetch = 0 : i64, scratch_operands = 0 : i64, tpu.core_type = #tpu.core_type<tc>, window_params = [{transform_indices = @transform_0, window_bounds = array<i64: 1>}, {transform_indices = @transform_1, window_bounds = array<i64: 2, 1024>}, {transform_indices = @transform_2, window_bounds = array<i64: 2, 1024>}]} {
    %c0 = arith.constant 0 : index
    %0 = memref.load %arg1[%c0] : memref<1xf32, #tpu.memory_space<smem>>
    %c0_0 = arith.constant 0 : index
    %c0_1 = arith.constant 0 : index
    %1 = vector.load %arg2[%c0_0, %c0_1] : memref<2x1024xf32, #tpu.memory_space<vmem>>, vector<2x1024xf32>
    %2 = vector.broadcast %0 : f32 to vector<2x1024xf32>
    %3 = arith.mulf %2, %1 : vector<2x1024xf32>
    %c0_2 = arith.constant 0 : index
    %c0_3 = arith.constant 0 : index
    %4 = vector.load %arg3[%c0_2, %c0_3] : memref<2x1024xf32, #tpu.memory_space<vmem>>, vector<2x1024xf32>
    tpu.vector_store %arg3[%c0_2, %c0_3], %3 {strides = array<i32>} : memref<2x1024xf32, #tpu.memory_space<vmem>>, vector<2x1024xf32>,
    return
  }
  func.func @transform_0(%arg0: i32) -> i32 {
    %c0_i32 = arith.constant 0 : i32
    %c0_i32_0 = arith.constant 0 : i32
    return %c0_i32 : i32
  }
  func.func @transform_1(%arg0: i32) -> (i32, i32) {
    %c0_i32 = arith.constant 0 : i32
    %c0_i32_0 = arith.constant 0 : i32
    return %arg0, %c0_i32 : i32, i32
  }
  func.func @transform_2(%arg0: i32) -> (i32, i32) {
    %c0_i32 = arith.constant 0 : i32
    %c0_i32_0 = arith.constant 0 : i32
    return %arg0, %c0_i32 : i32, i32
  }
}

</mosaic_0001>

<llo_original>
// kernel: tpu_custom_call.1
$region0: #{tpu_custom_call.1}
  #allocation0 [shape = 'u32[]', space=smem, size = 0x4, offset = 0x4, fixed_abs, tag = 'smem constant byte address 0x4 - core index']
  #allocation1 [shape = 'u32[72,128]{1,0:T(1,128)}', space=vmem, size = 0x9000, scoped, tag = 'internal scratch']
  #allocation2 [shape = 'f32[1]{0:T(128)S(6)}', space=smem, size = 0x200, scoped, tag = 'scoped memory for tpu_custom_call.1']
  %s0 = inlined_call_operand.<no memory space> [shape: f32[1], index: 0, kind: input, shape index: {}]
  %s1 = inlined_call_operand.hbm [shape: f32[2,1024], index: 1, kind: input, shape index: {}]
  %s2 = inlined_call_operand.hbm [shape: f32[2,1024], index: 2, kind: output, shape index: {}]
  %s3 = sld [smem:[#allocation0]]
  $region22: #{tpu_custom_call.1} parent=0
    _
  %s5 = ssub.s32 1, %s3
  %s6 = scalar_select 0, %s5, %s3
  %7 = sst [smem:[#allocation2]] %s0
  $region1: #{tpu_custom_call.1} parent=0
    #allocation3 [shape = 'u8[8192]{0}', space=vmem, size = 0x2000, scoped, tag = 'input window, operand 1, single buffered']
    #allocation4 [shape = 's32[1]{0}', space=sflag, size = 0x4, scoped, tag = 'scoped memory for tpu_custom_call.1']
    #allocation5 [shape = 's32[1]{0}', space=sflag, size = 0x4, scoped, tag = 'scoped memory for tpu_custom_call.1']
    #allocation6 [shape = 'u8[8192]{0}', space=vmem, size = 0x2000, scoped, tag = 'output window, operand 0, single buffered']
    %8 = vsyncpa [#allocation4], 0
    %9 = vsyncpa [#allocation5], 0
    // Predicated region
    $region2: #{tpu_custom_call.1} parent=1 // pred_check
      _
    $region3: #{tpu_custom_call.1} parent=1 // pred_check_branch
      %11 = sbr.rel (0) target = $region5
    $region4: #{tpu_custom_call.1} parent=1 // pred_region
      _
    $region5: #{tpu_custom_call.1} parent=1 // pred_fallthru
      _
    // Predicated region
    $region6: #{tpu_custom_call.1} parent=1 // pred_check
      _
    $region7: #{tpu_custom_call.1} parent=1 // pred_check_branch
      %13 = sbr.rel (0) target = $region9
    $region8: #{tpu_custom_call.1} parent=1 // pred_region
      %15 = vsyncadd [#allocation4], 0
      %s17 = sshll.u32 %s1, 4
      %s18 = int_to_ptr.hbm [resolvable:$true] %s17
      %s19 = sshll.u32 [#allocation3], 4
      %s20 = int_to_ptr.vmem [resolvable:$true] %s19
      %22 = dma.hbm_to_vmem [thread:$0]  %s18, 256, %s20, [#allocation4]
    $region9: #{tpu_custom_call.1} parent=1 // pred_fallthru
      _
    // Predicated region
    $region10: #{tpu_custom_call.1} parent=1 // pred_check
      _
    $region11: #{tpu_custom_call.1} parent=1 // pred_check_branch
      %24 = sbr.rel (0) target = $region13
    $region12: #{tpu_custom_call.1} parent=1 // pred_region
      %26 = dma.done [#allocation4], 256
    $region13: #{tpu_custom_call.1} parent=1 // pred_fallthru
      _
    %s27 = sld [smem:[#allocation2]]
    %v28 = vld [vmem:[#allocation3] sm:$0xff]
    %v29 = vld [vmem:[#allocation3 + $0x8] sm:$0xff]
    %v30 = vstv %s27
    %v31 = vmul.f32 %v30, %v28
    %v32 = vmul.f32 %v30, %v29
    %33 = vst [vmem:[#allocation6] sm:$0xff] %v31
    %34 = vst [vmem:[#allocation6 + $0x8] sm:$0xff] %v32
    // Predicated region
    $region14: #{tpu_custom_call.1} parent=1 // pred_check
      _
    $region15: #{tpu_custom_call.1} parent=1 // pred_check_branch
      %36 = sbr.rel (0) target = $region17
    $region16: #{tpu_custom_call.1} parent=1 // pred_region
      %38 = vsyncadd [#allocation5], 0
      %s40 = sshll.u32 [#allocation6], 4
      %s41 = int_to_ptr.vmem [resolvable:$true] %s40
      %s42 = sshll.u32 %s2, 4
      %s43 = int_to_ptr.hbm [resolvable:$true] %s42
      %45 = dma.vmem_to_hbm [thread:$0]  %s41, 256, %s43, [#allocation5]
    $region17: #{tpu_custom_call.1} parent=1 // pred_fallthru
      _
    // Predicated region
    $region18: #{tpu_custom_call.1} parent=1 // pred_check
      _
    $region19: #{tpu_custom_call.1} parent=1 // pred_check_branch
      %47 = sbr.rel (0) target = $region21
    $region20: #{tpu_custom_call.1} parent=1 // pred_region
      %49 = dma.done [#allocation5], 256
    $region21: #{tpu_custom_call.1} parent=1 // pred_fallthru
      _
    %50 = vsyncpa [#allocation4], 1
    %51 = vsyncpa [#allocation5], 1

</llo_original>
